<compile_context>
chip_gen: v5e
topology: v5e:2x2
jax: 0.10.0
libtpu: 0.0.40
codegen_flags: <defaults>
</compile_context>

<pallas_src>
import jax
import jax.numpy as jnp
from jax.experimental import pallas as pl
from jax.experimental.pallas import tpu as pltpu


def attention_kernel(dec_proj_ref, enc_ref, w2t_ref, v_ref, ctx_ref, attw_ref):
    # Per-grid-step shapes:
    #   dec_proj_ref : (TB, H)     dec @ W1^T + b   (precomputed outside, f32)
    #   enc_ref      : (TB, S, H)  encoder outputs (f32 or bf16 stream)
    #   w2t_ref      : (H, H)      attention.weight[:, H:].T (same dtype as enc)
    #   v_ref        : (1, H)      v.weight (f32)
    #   ctx_ref      : (TB, H)     context output (f32)
    #   attw_ref     : (TB, S)     attention weights output (f32)
    TB, S, H = enc_ref.shape
    enc = enc_ref[...]                                        # (TB, S, H)

    # Encoder projection: one big (TB*S, H) @ (H, H) MXU matmul, f32 accumulation.
    # (S should be a multiple of the sublane tile — 8 for f32, 16 for bf16 — so
    # the collapse reshape is layout-free.)
    enc_proj = jnp.dot(enc.reshape(TB * S, H), w2t_ref[...],
                       preferred_element_type=jnp.float32).reshape(TB, S, H)

    # energy = tanh([dec, enc] @ W^T + b), with the dec part precomputed.
    energy = jnp.tanh(enc_proj + dec_proj_ref[...].reshape(TB, 1, H))

    # scores = energy @ v^T, as a VPU multiply + lane reduction (no N=1 matmul).
    scores = jnp.sum(energy * v_ref[...], axis=-1)            # (TB, S), f32

    # Softmax over the sequence axis (f32).
    m = jnp.max(scores, axis=-1, keepdims=True)               # (TB, 1)
    e = jnp.exp(scores - m)                                   # (TB, S)
    denom = jnp.sum(e, axis=-1, keepdims=True)                # (TB, 1)
    r = pl.reciprocal(denom, approx=True)                     # EUP seed (free slot)
    r = r * (2.0 - denom * r)                                 # one Newton step
    weights = e * r                                           # (TB, S)

    # context = bmm(weights, enc): broadcast-multiply + reduce over S (VPU/XLU).
    context = jnp.sum(weights.reshape(TB, S, 1) * enc.astype(jnp.float32), axis=1)

    ctx_ref[...] = context.astype(ctx_ref.dtype)
    attw_ref[...] = weights.astype(attw_ref.dtype)


def _vmem_limit_bytes():
    """Scoped-VMEM limit: ~3/4 of physical VMEM (fallback 64 MiB -> 48 MiB)."""
    phys = 64 * 1024 * 1024
    try:
        info = pltpu.get_tpu_info()
        phys = int(getattr(info, "vmem_capacity_bytes", phys) or phys)
    except Exception:
        pass
    return min(int(phys * 3 // 4), 128 * 1024 * 1024)


def _pick_block_b(B, S, H, enc_itemsize, vmem_budget, enc_buffers):
    """Largest batch block (multiple of 8 dividing B) whose working set fits."""
    def step_bytes(tb):
        return (enc_buffers * tb * S * H * enc_itemsize      # enc pipeline buffers
                + 2 * tb * H * 4                             # dec_proj (double buffered)
                + H * H * enc_itemsize + 8 * H * 4           # W2^T + v (single buffered)
                + 2 * (tb * H + tb * S) * 4                  # outputs (double buffered)
                + 3 * tb * S * H * 4)                        # f32 intermediates
    if B % 8 != 0:
        return B                                             # single full-batch block
    cands = [tb for tb in range(8, min(B, 512) + 1, 8) if B % tb == 0]
    fitting = [tb for tb in cands if step_bytes(tb) <= vmem_budget]
    if not fitting:
        return 8
    multi = [tb for tb in fitting if tb <= B // 2]           # prefer >=2 grid steps (v7x)
    return max(multi) if multi else max(fitting)


def _spec(shape, index_map, buffers=None):
    """BlockSpec with optional explicit buffer depth (fallback if unsupported)."""
    if buffers is None:
        return pl.BlockSpec(shape, index_map)
    try:
        return pl.BlockSpec(shape, index_map, pipeline_mode=pl.Buffered(buffers))
    except TypeError:
        return pl.BlockSpec(shape, index_map)


def attention_forward(decoder_hidden, encoder_outputs, att_w, att_b, v_w,
                      *, matmul_dtype=jnp.float32, block_b=None, enc_buffers=2):
    """
    decoder_hidden : (B, H) float32
    encoder_outputs: (B, S, H) float32
    att_w          : (H, 2H)   nn.Linear(hidden*2, hidden).weight
    att_b          : (H,)      nn.Linear(hidden*2, hidden).bias
    v_w            : (1, H)    nn.Linear(hidden, 1, bias=False).weight
    matmul_dtype   : dtype used to stream enc / W2^T and feed the MXU
                     (jnp.bfloat16 halves HBM traffic; accumulation stays f32).
    Returns (context (B, H), attention_weights (B, S)).
    """
    B, S, H = encoder_outputs.shape
    matmul_dtype = jnp.dtype(matmul_dtype)
    enc_itemsize = matmul_dtype.itemsize

    decoder_hidden = decoder_hidden.astype(jnp.float32)
    att_w = att_w.astype(jnp.float32)
    att_b = att_b.astype(jnp.float32)
    v_w = v_w.astype(jnp.float32)

    # Split the concatenated Linear weight; hoist the decoder projection
    # (one full-width XLA matmul, including the bias).
    w1 = att_w[:, :H]                                        # (H, H)
    w2t = att_w[:, H:].T.astype(matmul_dtype)                # (H, H), transposed once
    dec_proj = decoder_hidden @ w1.T + att_b                 # (B, H), f32

    # No jnp.pad of encoder_outputs (the padding HBM copy was the biggest
    # memory-system cost); the cast is the only optional materialization.
    enc_in = encoder_outputs.astype(matmul_dtype)            # (B, S, H)

    vmem_limit = _vmem_limit_bytes()
    if block_b is None:
        block_b = _pick_block_b(B, S, H, enc_itemsize, vmem_limit // 2, enc_buffers)
    # Only accept block sizes that keep the grid pad-free and sublane-dense.
    TB = block_b if (block_b == B or (block_b % 8 == 0 and B % block_b == 0)) else B
    nb = B // TB

    grid_spec = pltpu.PrefetchScalarGridSpec(
        num_scalar_prefetch=0,
        grid=(nb,),
        in_specs=[
            _spec((TB, H), lambda i: (i, 0)),                        # dec_proj
            _spec((TB, S, H), lambda i: (i, 0, 0), enc_buffers),     # encoder outputs
            _spec((H, H), lambda i: (0, 0), 1),                      # W2^T (constant)
            _spec((1, H), lambda i: (0, 0), 1),                      # v (constant)
        ],
        out_specs=[
            _spec((TB, H), lambda i: (i, 0)),                        # context
            _spec((TB, S), lambda i: (i, 0)),                        # attention weights
        ],
    )

    cost = pl.CostEstimate(
        flops=2 * B * S * H * H + 6 * B * S * H,
        transcendentals=B * S * H + B * S,
        bytes_accessed=(B * S * H * enc_itemsize + H * H * enc_itemsize
                        + 4 * (B * H + H + B * H + B * S)),
    )

    ctx, attw = pl.pallas_call(
        attention_kernel,
        out_shape=(
            jax.ShapeDtypeStruct((B, H), jnp.float32),
            jax.ShapeDtypeStruct((B, S), jnp.float32),
        ),
        grid_spec=grid_spec,
        compiler_params=pltpu.CompilerParams(
            dimension_semantics=("parallel",),
            vmem_limit_bytes=vmem_limit,
        ),
        cost_estimate=cost,
    )(dec_proj, enc_in, w2t, v_w)

    return ctx, attw


def attention_reference(decoder_hidden, encoder_outputs, att_w, att_b, v_w):
    """Pure-JAX reference mirroring the PyTorch forward exactly (f32)."""
    B, S, H = encoder_outputs.shape
    dec_rep = jnp.broadcast_to(decoder_hidden[:, None, :], (B, S, H))
    combined = jnp.concatenate([dec_rep, encoder_outputs], axis=2)    # (B, S, 2H)
    energy = jnp.tanh(combined @ att_w.T + att_b)                     # (B, S, H)
    scores = (energy @ v_w.T)[..., 0]                                 # (B, S)
    attw = jax.nn.softmax(scores, axis=1)
    context = jnp.einsum('bs,bsh->bh', attw, encoder_outputs)
    return context, attw


def _make_inputs(key, B, S, H):
    k_dec, k_enc, k_w, k_b, k_v = jax.random.split(key, 5)
    decoder_hidden = jax.random.normal(k_dec, (B, H), dtype=jnp.float32)
    encoder_outputs = jax.random.normal(k_enc, (B, S, H), dtype=jnp.float32)
    bound_att = (2.0 * H) ** -0.5
    att_w = jax.random.uniform(k_w, (H, 2 * H), jnp.float32,
                               minval=-bound_att, maxval=bound_att)
    att_b = jax.random.uniform(k_b, (H,), jnp.float32,
                               minval=-bound_att, maxval=bound_att)
    bound_v = float(H) ** -0.5
    v_w = jax.random.uniform(k_v, (1, H), jnp.float32,
                             minval=-bound_v, maxval=bound_v)
    return decoder_hidden, encoder_outputs, att_w, att_b, v_w


if __name__ == "__main__":
    key = jax.random.PRNGKey(0)
    k1, k2 = jax.random.split(key)

    # Config 1: small shapes from the module spec, f32 end to end, single block.
    B, S, H = 2, 8, 32
    dec, enc, att_w, att_b, v_w = _make_inputs(k1, B, S, H)
    ctx, attw = attention_forward(dec, enc, att_w, att_b, v_w)
    jax.block_until_ready((ctx, attw))
    ctx_ref, attw_ref = attention_reference(dec, enc, att_w, att_b, v_w)
    assert ctx.shape == (B, H) and attw.shape == (B, S)
    assert jnp.allclose(ctx, ctx_ref, atol=1e-5, rtol=1e-5)
    assert jnp.allclose(attw, attw_ref, atol=1e-5, rtol=1e-5)
    assert jnp.allclose(jnp.sum(attw, axis=1), 1.0, atol=1e-5)

    # Config 2: sublane/lane-aligned shapes, multi-step batch grid (TB=8, nb=2).
    B, S, H = 16, 16, 128
    dec, enc, att_w, att_b, v_w = _make_inputs(k2, B, S, H)
    ctx, attw = attention_forward(dec, enc, att_w, att_b, v_w)        # f32 path
    jax.block_until_ready((ctx, attw))
    ctx_ref, attw_ref = attention_reference(dec, enc, att_w, att_b, v_w)
    assert jnp.allclose(ctx, ctx_ref, atol=1e-5, rtol=1e-5)
    assert jnp.allclose(attw, attw_ref, atol=1e-5, rtol=1e-5)

    # bf16 streaming path: enc / W2^T in bf16, f32 accumulation and softmax.
    ctx16, attw16 = attention_forward(dec, enc, att_w, att_b, v_w,
                                      matmul_dtype=jnp.bfloat16)
    jax.block_until_ready((ctx16, attw16))
    assert jnp.allclose(ctx16, ctx_ref, atol=5e-2, rtol=5e-2)
    assert jnp.allclose(attw16, attw_ref, atol=5e-2, rtol=5e-2)
    assert jnp.allclose(jnp.sum(attw16, axis=1), 1.0, atol=1e-3)

    print("KERNEL_OK")
</pallas_src>

<mosaic_0001>
module attributes {stable_mosaic.version = 11 : i64} {
  func.func @attention_kernel(%arg0: i32, %arg1: memref<2x32xf32, #tpu.memory_space<vmem>>, %arg2: memref<2x8x32xf32, #tpu.memory_space<vmem>>, %arg3: memref<32x32xf32, #tpu.memory_space<vmem>>, %arg4: memref<1x32xf32, #tpu.memory_space<vmem>>, %arg5: memref<2x32xf32, #tpu.memory_space<vmem>>, %arg6: memref<2x8xf32, #tpu.memory_space<vmem>>) attributes {dimension_semantics = [#tpu.dimension_semantics<parallel>], iteration_bounds = array<i64: 1>, scalar_prefetch = 0 : i64, scratch_operands = 0 : i64, tpu.core_type = #tpu.core_type<tc>, window_params = [{transform_indices = @transform_0, window_bounds = array<i64: 2, 32>}, {pipeline_mode = #tpu.pipeline_mode<double_buffered>, transform_indices = @transform_1, window_bounds = array<i64: 2, 8, 32>}, {pipeline_mode = #tpu.pipeline_mode<synchronous>, transform_indices = @transform_2, window_bounds = array<i64: 32, 32>}, {pipeline_mode = #tpu.pipeline_mode<synchronous>, transform_indices = @transform_3, window_bounds = array<i64: 1, 32>}, {transform_indices = @transform_4, window_bounds = array<i64: 2, 32>}, {transform_indices = @transform_5, window_bounds = array<i64: 2, 8>}]} {
    %c0 = arith.constant 0 : index
    %c0_0 = arith.constant 0 : index
    %c0_1 = arith.constant 0 : index
    %0 = vector.load %arg2[%c0, %c0_0, %c0_1] : memref<2x8x32xf32, #tpu.memory_space<vmem>>, vector<2x8x32xf32>
    %1 = vector.shape_cast %0 : vector<2x8x32xf32> to vector<16x32xf32>
    %c0_2 = arith.constant 0 : index
    %c0_3 = arith.constant 0 : index
    %2 = vector.load %arg3[%c0_2, %c0_3] : memref<32x32xf32, #tpu.memory_space<vmem>>, vector<32x32xf32>
    %cst = arith.constant dense<0.000000e+00> : vector<16x32xf32>
    %3 = tpu.matmul %1, %2, %cst {dimension_numbers = #tpu.dot_dimension_numbers<[1], [0], [0], [1], [0, 0, 1, 1], [], []>} : vector<16x32xf32>, vector<32x32xf32>, vector<16x32xf32> -> vector<16x32xf32>
    %4 = vector.shape_cast %3 : vector<16x32xf32> to vector<2x8x32xf32>
    %c0_4 = arith.constant 0 : index
    %c0_5 = arith.constant 0 : index
    %5 = vector.load %arg1[%c0_4, %c0_5] : memref<2x32xf32, #tpu.memory_space<vmem>>, vector<2x32xf32>
    %6 = vector.shape_cast %5 : vector<2x32xf32> to vector<2x1x32xf32>
    %7 = vector.broadcast %6 : vector<2x1x32xf32> to vector<2x8x32xf32>
    %8 = arith.addf %4, %7 : vector<2x8x32xf32>
    %9 = math.tanh %8 : vector<2x8x32xf32>
    %c0_6 = arith.constant 0 : index
    %c0_7 = arith.constant 0 : index
    %10 = vector.load %arg4[%c0_6, %c0_7] : memref<1x32xf32, #tpu.memory_space<vmem>>, vector<1x32xf32>
    %11 = vector.shape_cast %10 : vector<1x32xf32> to vector<1x1x32xf32>
    %12 = vector.broadcast %11 : vector<1x1x32xf32> to vector<2x8x32xf32>
    %13 = arith.mulf %9, %12 : vector<2x8x32xf32>
    %cst_8 = arith.constant dense<0.000000e+00> : vector<2x8xf32>
    %14 = vector.multi_reduction <add>, %13, %cst_8 [2] : vector<2x8x32xf32> to vector<2x8xf32>
    %cst_9 = arith.constant dense<0xFF800000> : vector<2xf32>
    %15 = vector.multi_reduction <maximumf>, %14, %cst_9 [1] : vector<2x8xf32> to vector<2xf32>
    %16 = vector.shape_cast %15 : vector<2xf32> to vector<2x1xf32>
    %17 = vector.broadcast %16 : vector<2x1xf32> to vector<2x8xf32>
    %18 = arith.subf %14, %17 : vector<2x8xf32>
    %19 = math.exp %18 : vector<2x8xf32>
    %cst_10 = arith.constant dense<0.000000e+00> : vector<2xf32>
    %20 = vector.multi_reduction <add>, %19, %cst_10 [1] : vector<2x8xf32> to vector<2xf32>
    %21 = vector.shape_cast %20 : vector<2xf32> to vector<2x1xf32>
    %22 = tpu.reciprocal %21 {approx = true} : vector<2x1xf32> -> vector<2x1xf32>
    %23 = arith.mulf %21, %22 : vector<2x1xf32>
    %cst_11 = arith.constant 2.000000e+00 : f32
    %24 = vector.broadcast %cst_11 : f32 to vector<2x1xf32>
    %25 = arith.subf %24, %23 : vector<2x1xf32>
    %26 = arith.mulf %22, %25 : vector<2x1xf32>
    %27 = vector.broadcast %26 : vector<2x1xf32> to vector<2x8xf32>
    %28 = arith.mulf %19, %27 : vector<2x8xf32>
    %29 = vector.shape_cast %28 : vector<2x8xf32> to vector<2x8x1xf32>
    %30 = vector.broadcast %29 : vector<2x8x1xf32> to vector<2x8x32xf32>
    %31 = arith.mulf %30, %0 : vector<2x8x32xf32>
    %cst_12 = arith.constant dense<0.000000e+00> : vector<2x32xf32>
    %32 = vector.multi_reduction <add>, %31, %cst_12 [1] : vector<2x8x32xf32> to vector<2x32xf32>
    %c0_13 = arith.constant 0 : index
    %c0_14 = arith.constant 0 : index
    %33 = vector.load %arg5[%c0_13, %c0_14] : memref<2x32xf32, #tpu.memory_space<vmem>>, vector<2x32xf32>
    tpu.vector_store %arg5[%c0_13, %c0_14], %32 {strides = array<i32>} : memref<2x32xf32, #tpu.memory_space<vmem>>, vector<2x32xf32>,
    %c0_15 = arith.constant 0 : index
    %c0_16 = arith.constant 0 : index
    %34 = vector.load %arg6[%c0_15, %c0_16] : memref<2x8xf32, #tpu.memory_space<vmem>>, vector<2x8xf32>
    tpu.vector_store %arg6[%c0_15, %c0_16], %28 {strides = array<i32>} : memref<2x8xf32, #tpu.memory_space<vmem>>, vector<2x8xf32>,
    return
  }
  func.func @transform_0(%arg0: i32) -> (i32, i32) {
    %c0_i32 = arith.constant 0 : i32
    %c0_i32_0 = arith.constant 0 : i32
    return %arg0, %c0_i32 : i32, i32
  }
  func.func @transform_1(%arg0: i32) -> (i32, i32, i32) {
    %c0_i32 = arith.constant 0 : i32
    %c0_i32_0 = arith.constant 0 : i32
    %c0_i32_1 = arith.constant 0 : i32
    return %arg0, %c0_i32, %c0_i32_0 : i32, i32, i32
  }
  func.func @transform_2(%arg0: i32) -> (i32, i32) {
    %c0_i32 = arith.constant 0 : i32
    %c0_i32_0 = arith.constant 0 : i32
    %c0_i32_1 = arith.constant 0 : i32
    return %c0_i32, %c0_i32_0 : i32, i32
  }
  func.func @transform_3(%arg0: i32) -> (i32, i32) {
    %c0_i32 = arith.constant 0 : i32
    %c0_i32_0 = arith.constant 0 : i32
    %c0_i32_1 = arith.constant 0 : i32
    return %c0_i32, %c0_i32_0 : i32, i32
  }
  func.func @transform_4(%arg0: i32) -> (i32, i32) {
    %c0_i32 = arith.constant 0 : i32
    %c0_i32_0 = arith.constant 0 : i32
    return %arg0, %c0_i32 : i32, i32
  }
  func.func @transform_5(%arg0: i32) -> (i32, i32) {
    %c0_i32 = arith.constant 0 : i32
    %c0_i32_0 = arith.constant 0 : i32
    return %arg0, %c0_i32 : i32, i32
  }
}

</mosaic_0001>

<llo_original>
// kernel: tpu_custom_call.1
$region0: #{tpu_custom_call.1}
  #allocation0 [shape = 'u32[]', space=smem, size = 0x4, offset = 0x4, fixed_abs, tag = 'smem constant byte address 0x4 - core index']
  #allocation1 [shape = 'u32[72,128]{1,0:T(1,128)}', space=vmem, size = 0x9000, scoped, tag = 'internal scratch']
  %s0 = inlined_call_operand.hbm [shape: f32[2,32], index: 0, kind: input, shape index: {}]
  %s1 = inlined_call_operand.hbm [shape: f32[2,8,32], index: 1, kind: input, shape index: {}]
  %s2 = inlined_call_operand.hbm [shape: f32[32,32], index: 2, kind: input, shape index: {}]
  %s3 = inlined_call_operand.vmem [shape: f32[1,32], index: 3, kind: input, shape index: {}]
  %s4 = inlined_call_operand.hbm [shape: f32[2,32], index: 4, kind: output, shape index: {0}]
  %s5 = inlined_call_operand.hbm [shape: f32[2,8], index: 5, kind: output, shape index: {1}]
  %6 = xla_tuple %s4, %s5
  %s7 = sld [smem:[#allocation0]]
  $region46: #{tpu_custom_call.1} parent=0
    _
  %s9 = ssub.s32 1, %s7
  %s10 = scalar_select 0, %s9, %s7
  $region1: #{tpu_custom_call.1} parent=0
    #allocation2 [shape = 'u8[1024]{0}', space=vmem, size = 0x400, scoped, tag = 'input window, operand 0, single buffered']
    #allocation3 [shape = 's32[1]{0}', space=sflag, size = 0x4, scoped, tag = 'scoped memory for tpu_custom_call.1']
    #allocation4 [shape = 's32[1]{0}', space=sflag, size = 0x4, scoped, tag = 'scoped memory for tpu_custom_call.1']
    #allocation5 [shape = 'u8[8192]{0}', space=vmem, size = 0x2000, scoped, tag = 'input window, operand 1, single buffered']
    #allocation6 [shape = 's32[1]{0}', space=sflag, size = 0x4, scoped, tag = 'scoped memory for tpu_custom_call.1']
    #allocation7 [shape = 'u8[16384]{0}', space=vmem, size = 0x4000, scoped, tag = 'input window, operand 2, single buffered']
    #allocation8 [shape = 'u8[1024]{0}', space=vmem, size = 0x400, scoped, tag = 'output window, operand 0, single buffered']
    #allocation9 [shape = 'u8[1024]{0}', space=vmem, size = 0x400, scoped, tag = 'output window, operand 1, single buffered']
    #allocation10 [shape = 's32[1]{0}', space=sflag, size = 0x4, scoped, tag = 'scoped memory for tpu_custom_call.1']
    %11 = vsyncpa [#allocation3], 0
    %12 = vsyncpa [#allocation6], 0
    %13 = vsyncpa [#allocation4], 0
    %14 = vsyncpa [#allocation10], 0
    // Predicated region
    $region2: #{tpu_custom_call.1} parent=1 // pred_check
      _
    $region3: #{tpu_custom_call.1} parent=1 // pred_check_branch
      %16 = sbr.rel (0) target = $region5
    $region4: #{tpu_custom_call.1} parent=1 // pred_region
      %18 = vsyncadd [#allocation3], 0
      %s20 = sshll.u32 %s0, 4
      %s21 = int_to_ptr.hbm [resolvable:$true] %s20
      %s22 = sshll.u32 [#allocation2], 4
      %s23 = int_to_ptr.vmem [resolvable:$true] %s22
      %25 = dma.hbm_to_vmem [thread:$0]  %s21, 32, %s23, [#allocation3]
    $region5: #{tpu_custom_call.1} parent=1 // pred_fallthru
      _
    // Predicated region
    $region6: #{tpu_custom_call.1} parent=1 // pred_check
      _
    $region7: #{tpu_custom_call.1} parent=1 // pred_check_branch
      %27 = sbr.rel (0) target = $region9
    $region8: #{tpu_custom_call.1} parent=1 // pred_region
      %29 = vsyncadd [#allocation6], 0
      %s30 = sshll.u32 %s1, 4
      %s31 = int_to_ptr.hbm [resolvable:$true] %s30
      %s32 = sshll.u32 [#allocation5], 4
      %s33 = int_to_ptr.vmem [resolvable:$true] %s32
      %38 = dma.hbm_to_vmem [thread:$0]  %s31, 256, %s33, [#allocation6], 128, 128, 8
    $region9: #{tpu_custom_call.1} parent=1 // pred_fallthru
      _
    // Predicated region
    $region10: #{tpu_custom_call.1} parent=1 // pred_check
      _
    $region11: #{tpu_custom_call.1} parent=1 // pred_check_branch
      %40 = sbr.rel (0) target = $region13
    $region12: #{tpu_custom_call.1} parent=1 // pred_region
      %42 = vsyncadd [#allocation6], 0
      %s43 = sshll.u32 %s2, 4
      %s44 = int_to_ptr.hbm [resolvable:$true] %s43
      %s45 = sshll.u32 [#allocation7], 4
      %s46 = int_to_ptr.vmem [resolvable:$true] %s45
      %51 = dma.hbm_to_vmem [thread:$0]  %s44, 512, %s46, [#allocation6], 128, 128, 8
    $region13: #{tpu_custom_call.1} parent=1 // pred_fallthru
      _
    // Predicated region
    $region14: #{tpu_custom_call.1} parent=1 // pred_check
      _
    $region15: #{tpu_custom_call.1} parent=1 // pred_check_branch
      %53 = sbr.rel (0) target = $region17
    $region16: #{tpu_custom_call.1} parent=1 // pred_region
      _
    $region17: #{tpu_custom_call.1} parent=1 // pred_fallthru
      _
    // Predicated region
    $region18: #{tpu_custom_call.1} parent=1 // pred_check
      _
    $region19: #{tpu_custom_call.1} parent=1 // pred_check_branch
      %55 = sbr.rel (0) target = $region21
    $region20: #{tpu_custom_call.1} parent=1 // pred_region
      %57 = dma.done [#allocation3], 32
    $region21: #{tpu_custom_call.1} parent=1 // pred_fallthru
      _
    // Predicated region
    $region22: #{tpu_custom_call.1} parent=1 // pred_check
      _
    $region23: #{tpu_custom_call.1} parent=1 // pred_check_branch
      %59 = sbr.rel (0) target = $region25
    $region24: #{tpu_custom_call.1} parent=1 // pred_region
      %61 = dma.done [#allocation6], 256
    $region25: #{tpu_custom_call.1} parent=1 // pred_fallthru
      _
    // Predicated region
    $region26: #{tpu_custom_call.1} parent=1 // pred_check
      _
    $region27: #{tpu_custom_call.1} parent=1 // pred_check_branch
      %63 = sbr.rel (0) target = $region29
    $region28: #{tpu_custom_call.1} parent=1 // pred_region
      %65 = dma.done [#allocation6], 512
    $region29: #{tpu_custom_call.1} parent=1 // pred_fallthru
      _
    %v66 = vld [vmem:[#allocation5] sm:$0xff]
    %v67 = vld [vmem:[#allocation5 + $0x8] sm:$0xff]
    %v68 = vld [vmem:[#allocation7] sm:$0xff]
    %v69 = vld [vmem:[#allocation7 + $0x8] sm:$0xff]
    %v70 = vld [vmem:[#allocation7 + $0x10] sm:$0xff]
    %v71 = vld [vmem:[#allocation7 + $0x18] sm:$0xff]
    %vm72 = vcmask 261120
    %v74 = vsel %vm72, %v66, 0
    %v77 = vsel %vm72, %v67, 0
    %79 = vmatpush.msra.mxu0 0.0
    %80 = vmatpush.msra.mxu0 0.0
    %81 = vmatpush.msra.mxu0 0.0
    %82 = vmatpush.msra.mxu0 0.0
    %83 = vmatpush.msra.mxu0 0.0
    %84 = vmatpush.msra.mxu0 0.0
    %85 = vmatpush.msra.mxu0 0.0
    %86 = vmatpush.msra.mxu0 0.0
    %87 = vmatpush.msra.mxu0 0.0
    %88 = vmatpush.msra.mxu0 0.0
    %89 = vmatpush.msra.mxu0 0.0
    %90 = vmatpush.msra.mxu0 0.0
    %91 = vmatpush.msra.mxu0 %v71
    %92 = vmatpush.msra.mxu0 %v70
    %93 = vmatpush.msra.mxu0 %v69
    %94 = vmatpush.msra.mxu0 %v68
    %95 = vmatmul.f32.gmra.mxu0 %v74
    %v96 = vpop.f32.mrf.mxu0
    %v97 = vadd.f32 0.0, %v96
    %98 = vmatmul.f32.gmra.mxu0 %v77
    %v99 = vpop.f32.mrf.mxu0
    %v100 = vadd.f32 0.0, %v99
    %101 = vdwg.mxu0
    %v102 = vld [vmem:[#allocation2] sm:$0x3]
    %v104 = vrot.slane %v102, 1
    %v105 = vperm.slane %v102, 0
    %v106 = vperm.slane %v104, 0
    %v109 = vadd.f32 %v97, %v105
    %v110 = vadd.f32 %v100, %v106
    %v111 = vtanh.pop %v109
    %v112 = vtanh.pop %v110
    %v113 = vld [vmem:[%s3] sm:$0x1]
    %v115 = vperm.slane %v113, 0
    %v117 = vmul.f32 %v111, %v115
    %v118 = vmul.f32 %v112, %v115
    %v119 = vsel %vm72, %v117, 0.0
    %120 = vadd.xlane.f32.xlu0 %v119
    %v121 = vpop.xlane.xlu0 %120
    %v122 = vsel %vm72, %v118, 0.0
    %123 = vadd.xlane.f32.xlu0 %v122
    %v124 = vpop.xlane.xlu0 %123
    %v127 = vlaneseq
    %v128 = vand.u32 %v127, 127
    %v129 = vperm.slane %v121, %v128
    %v130 = vperm.slane %v124, %v128
    %vm131 = vcmask 1041409
    %v132 = vsel %vm131, %v130, %v129
    %vm134 = vcmask 58368
    %v135 = vsel %vm134, %v132, -inf
    %136 = vmax.xlane.f32.xlu0 %v135
    %v137 = vpop.xlane.xlu0 %136
    %v139 = vperm.slane %v137, 0
    %v140 = vperm.slane %v137, 1
    %v143 = vsub.f32 %v121, %v139
    %v144 = vsub.f32 %v124, %v140
    %v145 = vmul.f32 %v143, 1.442695
    %v146 = vpow.pop %v145
    %v147 = vmul.f32 %v144, 1.442695
    %v148 = vpow.pop %v147
    %151 = vset.pattern.permute.xlu0 0
    %152 = vperm.xlu0 %151, %v146
    %v153 = vpop.permute.xlu0 %152
    %154 = vset.pattern.permute.xlu0 0
    %155 = vperm.xlu0 %154, %v148
    %v156 = vpop.permute.xlu0 %155
    %v157 = vperm.slane %v153, %v128
    %v158 = vperm.slane %v156, %v128
    %v159 = vsel %vm131, %v158, %v157
    %v161 = vsel %vm134, %v159, 0.0
    %162 = vadd.xlane.f32.xlu0 %v161
    %v163 = vpop.xlane.xlu0 %162
    %v164 = vrcp.pop %v163
    %v165 = vmul.f32 %v163, %v164
    %v166 = vsub.f32 2.0, %v165
    %v167 = vmul.f32 %v164, %v166
    %v169 = vperm.slane %v167, 0
    %v170 = vperm.slane %v167, 1
    %v173 = vmul.f32 %v146, %v169
    %v174 = vmul.f32 %v148, %v170
    %176 = vset.pattern.permute.xlu0 0
    %177 = vperm.xlu0 %176, %v173
    %v178 = vpop.permute.xlu0 %177
    %181 = vset.pattern.permute.xlu0 0
    %182 = vperm.xlu0 %181, %v174
    %v183 = vpop.permute.xlu0 %182
    %v185 = vmul.f32 %v178, %v66
    %v186 = vmul.f32 %v183, %v67
    %v187 = vsel %vm72, %v185, 0.0
    %v188 = vrot.slane %v187, 4
    %v189 = vadd.f32 %v187, %v188
    %v190 = vrot.slane %v189, 2
    %v191 = vadd.f32 %v189, %v190
    %v192 = vrot.slane %v191, 1
    %v193 = vadd.f32 %v191, %v192
    %v194 = vsel %vm72, %v186, 0.0
    %v195 = vrot.slane %v194, 4
    %v196 = vadd.f32 %v194, %v195
    %v197 = vrot.slane %v196, 2
    %v198 = vadd.f32 %v196, %v197
    %v199 = vrot.slane %v198, 1
    %v200 = vadd.f32 %v198, %v199
    %v203 = vsel %vm131, %v200, %v193
    %vm205 = vcmask 254976
    %206 = vst.msk [vmem:[#allocation8] sm:$0x3] %vm205, %v203
    %v207 = vperm.slane %v178, %v128
    %v208 = vperm.slane %v183, %v128
    %v209 = vsel %vm131, %v208, %v207
    %211 = vst.msk [vmem:[#allocation9] sm:$0x3] %vm134, %v209
    // Predicated region
    $region30: #{tpu_custom_call.1} parent=1 // pred_check
      _
    $region31: #{tpu_custom_call.1} parent=1 // pred_check_branch
      %213 = sbr.rel (0) target = $region33
    $region32: #{tpu_custom_call.1} parent=1 // pred_region
      %215 = vsyncadd [#allocation4], 0
      %s217 = sshll.u32 [#allocation8], 4
      %s218 = int_to_ptr.vmem [resolvable:$true] %s217
      %s219 = sshll.u32 %s4, 4
      %s220 = int_to_ptr.hbm [resolvable:$true] %s219
      %222 = dma.vmem_to_hbm [thread:$0]  %s218, 32, %s220, [#allocation4]
    $region33: #{tpu_custom_call.1} parent=1 // pred_fallthru
      _
    // Predicated region
    $region34: #{tpu_custom_call.1} parent=1 // pred_check
      _
    $region35: #{tpu_custom_call.1} parent=1 // pred_check_branch
      %224 = sbr.rel (0) target = $region37
    $region36: #{tpu_custom_call.1} parent=1 // pred_region
      %226 = vsyncadd [#allocation10], 0
      %s228 = sshll.u32 [#allocation9], 4
      %s229 = int_to_ptr.vmem [resolvable:$true] %s228
      %s230 = sshll.u32 %s5, 4
      %s231 = int_to_ptr.hbm [resolvable:$true] %s230
      %233 = dma.vmem_to_hbm [thread:$0]  %s229, 32, %s231, [#allocation10]
    $region37: #{tpu_custom_call.1} parent=1 // pred_fallthru
      _
    // Predicated region
    $region38: #{tpu_custom_call.1} parent=1 // pred_check
      _
    $region39: #{tpu_custom_call.1} parent=1 // pred_check_branch
      %235 = sbr.rel (0) target = $region41
    $region40: #{tpu_custom_call.1} parent=1 // pred_region
      %237 = dma.done [#allocation4], 32
    $region41: #{tpu_custom_call.1} parent=1 // pred_fallthru
      _
    // Predicated region
    $region42: #{tpu_custom_call.1} parent=1 // pred_check
      _
    $region43: #{tpu_custom_call.1} parent=1 // pred_check_branch
      %239 = sbr.rel (0) target = $region45
    $region44: #{tpu_custom_call.1} parent=1 // pred_region
      %241 = dma.done [#allocation10], 32
    $region45: #{tpu_custom_call.1} parent=1 // pred_fallthru
      _
    %242 = vsyncpa [#allocation3], 1
    %243 = vsyncpa [#allocation6], 1
    %244 = vsyncpa [#allocation4], 1
    %245 = vsyncpa [#allocation10], 1

</llo_original>
